<compile_context>
chip_gen: v5e
topology: v5e:2x2
jax: 0.10.0
libtpu: 0.0.40
codegen_flags: <defaults>
</compile_context>

<pallas_src>
import functools

import jax
import jax.numpy as jnp
from jax.experimental import pallas as pl
from jax.experimental.pallas import tpu as pltpu

LANE = 128


def _round_up(x, m):
    return (x + m - 1) // m * m


def _pad_to(arr, shape):
    pads = [(0, s - d) for d, s in zip(arr.shape, shape)]
    return jnp.pad(arr, pads)


def _pick_tile(requested, n_lane):
    """Largest power-of-two multiple of LANE <= min(requested, n_lane)."""
    t = LANE
    while t * 2 <= min(requested, n_lane):
        t *= 2
    return t


def _sage_layer_kernel(a_ref, z_ref, xi_ref, dinv_ref, wr_ref, b_ref,
                       out_ref, acc_ref, *, apply_relu):
    """One SAGEConv layer: tiled (A @ Z) with fused mean-norm + self-proj epilogue."""
    k = pl.program_id(1)

    @pl.when(k == 0)
    def _():
        acc_ref[...] = jnp.zeros_like(acc_ref)

    # Aggregation: accumulate A[i-block, k-block] @ Z[k-block, :] in f32.
    # A streamed as int8 edge counts; VPU cast to bf16 feeds the MXU.
    acc_ref[...] += jnp.dot(a_ref[...].astype(jnp.bfloat16), z_ref[...],
                            preferred_element_type=jnp.float32)

    @pl.when(k == pl.num_programs(1) - 1)
    def _():
        # Mean normalization folded here: D^-1 (A Z) == (D^-1 A) Z.
        y = acc_ref[...] * dinv_ref[...]
        # Self (root) term: x_i @ W_r, plus lin_l bias; all in f32.
        y = y + jnp.dot(xi_ref[...], wr_ref[...],
                        preferred_element_type=jnp.float32)
        y = y + b_ref[...]
        if apply_relu:
            y = jnp.maximum(y, 0.0)
        out_ref[...] = y.astype(out_ref.dtype)


def _sage_layer(a_p, z_p, x_self, dinv, wr, b, *, tm, tk, apply_relu, out_dtype):
    n_p = a_p.shape[0]
    f_in_p = x_self.shape[1]
    f_out_p = wr.shape[1]
    grid = (n_p // tm, n_p // tk)

    # Right-size the VMEM limit from the double-buffered tile footprint + headroom
    # for Mosaic internal scratch; keeps us inside v7x's 64 MiB per-TC VMEM.
    out_bytes = jnp.dtype(out_dtype).itemsize
    footprint = (2 * tm * tk * 1              # A tile (int8)
                 + 2 * tk * f_out_p * 2       # Z slab (bf16)
                 + 2 * tm * f_in_p * 2        # x_self slab (bf16)
                 + 2 * tm * 4                 # deg_inv slab (f32)
                 + 2 * f_in_p * f_out_p * 2   # W_r (bf16)
                 + 2 * f_out_p * 4            # bias (f32)
                 + 2 * tm * f_out_p * out_bytes   # output tile
                 + tm * f_out_p * 4)          # accumulator (f32)
    vmem_limit = int(min(64 * 1024 * 1024, footprint + 16 * 1024 * 1024))

    kernel = functools.partial(_sage_layer_kernel, apply_relu=apply_relu)
    return pl.pallas_call(
        kernel,
        out_shape=jax.ShapeDtypeStruct((n_p, f_out_p), out_dtype),
        grid_spec=pltpu.PrefetchScalarGridSpec(
            num_scalar_prefetch=0,
            grid=grid,
            in_specs=[
                pl.BlockSpec((tm, tk), lambda i, k: (i, k)),            # A (int8 counts)
                pl.BlockSpec((tk, f_out_p), lambda i, k: (k, 0)),       # Z = X @ W_l (bf16)
                pl.BlockSpec((tm, f_in_p), lambda i, k: (i, 0)),        # x_self rows (bf16)
                pl.BlockSpec((tm, 1), lambda i, k: (i, 0)),             # 1/deg (f32)
                pl.BlockSpec((f_in_p, f_out_p), lambda i, k: (0, 0)),   # W_r (bf16)
                pl.BlockSpec((1, f_out_p), lambda i, k: (0, 0)),        # bias (f32)
            ],
            out_specs=pl.BlockSpec((tm, f_out_p), lambda i, k: (i, 0)),
            scratch_shapes=[pltpu.VMEM((tm, f_out_p), jnp.float32)],
        ),
        compiler_params=pltpu.CompilerParams(
            dimension_semantics=("parallel", "arbitrary"),
            vmem_limit_bytes=vmem_limit,
        ),
    )(a_p, z_p, x_self, dinv, wr, b)


def build_graph_operands(edge_index, num_nodes, n_pad):
    """Dense int8 edge-count adjacency (built directly at padded size) + 1/deg."""
    src = edge_index[0]
    dst = edge_index[1]
    # Exact edge counts (duplicates counted, matching scatter-mean semantics);
    # single O(N_pad^2) pass, already in the 1-byte storage dtype.
    a = jnp.zeros((n_pad, n_pad), jnp.int8).at[dst, src].add(
        jnp.ones_like(src, dtype=jnp.int8))
    # In-degree via O(E) scatter (no O(N^2) row-sum / divide passes).
    deg = jnp.zeros((n_pad,), jnp.float32).at[dst].add(1.0)
    deg_inv = 1.0 / jnp.maximum(deg, 1.0)   # no in-edges -> agg is 0 anyway
    return a, deg_inv[:, None]


def gnn_encoder(x, edge_index, params, *, tile_m=1024, tile_k=512):
    n, f_in = x.shape
    hidden = params["wl1"].shape[1]
    f_out = params["wl2"].shape[1]

    # Pad feature dims to lane width (128) for lane-dense, unmasked stores.
    f_in_p = _round_up(f_in, LANE)
    hid_p = _round_up(hidden, LANE)
    f_out_p = _round_up(f_out, LANE)

    # Decoupled node-dim tiles: big tm (cuts the Z re-stream), roofline-sized tk.
    n_lane = _round_up(n, LANE)
    tm = _pick_tile(tile_m, n_lane)
    tk = _pick_tile(tile_k, n_lane)
    n_p = _round_up(n, max(tm, tk))
    # Keep >= 2 blocks on the "parallel" i-axis so v7x's second TensorCore has work.
    if n_p // tm < 2 and tm >= 2 * LANE:
        tm //= 2

    a_p, dinv_p = build_graph_operands(edge_index, n, n_p)

    x_p = _pad_to(x, (n_p, f_in_p)).astype(jnp.bfloat16)

    # Per-layer weights, zero-padded to lane width.
    wr1 = _pad_to(params["wr1"], (f_in_p, hid_p)).astype(jnp.bfloat16)
    b1 = _pad_to(params["bl1"], (1, hid_p)).astype(jnp.float32)
    wr2 = _pad_to(params["wr2"], (hid_p, f_out_p)).astype(jnp.bfloat16)
    b2 = _pad_to(params["bl2"], (1, f_out_p)).astype(jnp.float32)

    # Re-association: Z = X @ W_l is a cheap O(N*F*H) matmul done once per layer;
    # the Pallas layer then streams Z instead of X through the O(N^2) aggregation.
    z1 = _pad_to(jnp.dot(x, params["wl1"],
                         preferred_element_type=jnp.float32),
                 (n_p, hid_p)).astype(jnp.bfloat16)
    h_p = _sage_layer(a_p, z1, x_p, dinv_p, wr1, b1, tm=tm, tk=tk,
                      apply_relu=True, out_dtype=jnp.bfloat16)

    wl2 = _pad_to(params["wl2"], (hid_p, f_out_p)).astype(jnp.bfloat16)
    z2 = jnp.dot(h_p, wl2, preferred_element_type=jnp.float32).astype(jnp.bfloat16)
    out_p = _sage_layer(a_p, z2, h_p, dinv_p, wr2, b2, tm=tm, tk=tk,
                        apply_relu=False, out_dtype=jnp.float32)
    return out_p[:n, :f_out]


def reference(x, edge_index, params):
    # Pure-JAX f32 reference for correctness check.
    n = x.shape[0]
    src, dst = edge_index[0], edge_index[1]
    a = jnp.zeros((n, n), jnp.float32).at[dst, src].add(1.0)
    deg = a.sum(axis=1, keepdims=True)
    a = a / jnp.maximum(deg, 1.0)
    h = jnp.maximum(a @ x @ params["wl1"] + params["bl1"] + x @ params["wr1"], 0.0)
    return a @ h @ params["wl2"] + params["bl2"] + h @ params["wr2"]


def init_params(key, in_channels, hidden_channels, out_channels):
    ks = jax.random.split(key, 6)
    s1 = 1.0 / jnp.sqrt(in_channels)
    s2 = 1.0 / jnp.sqrt(hidden_channels)
    return {
        "wl1": jax.random.uniform(ks[0], (in_channels, hidden_channels), jnp.float32, -s1, s1),
        "wr1": jax.random.uniform(ks[1], (in_channels, hidden_channels), jnp.float32, -s1, s1),
        "bl1": jax.random.uniform(ks[2], (1, hidden_channels), jnp.float32, -s1, s1),
        "wl2": jax.random.uniform(ks[3], (hidden_channels, out_channels), jnp.float32, -s2, s2),
        "wr2": jax.random.uniform(ks[4], (hidden_channels, out_channels), jnp.float32, -s2, s2),
        "bl2": jax.random.uniform(ks[5], (1, out_channels), jnp.float32, -s2, s2),
    }


if __name__ == "__main__":
    key = jax.random.PRNGKey(0)
    k_x, k_e, k_p = jax.random.split(key, 3)

    num_nodes = 8
    num_edges = 16
    in_channels = 16
    hidden_channels = 32
    out_channels = 16

    x = jax.random.normal(k_x, (num_nodes, in_channels), jnp.float32)
    edge_index = jax.random.randint(k_e, (2, num_edges), 0, num_nodes, jnp.int32)
    params = init_params(k_p, in_channels, hidden_channels, out_channels)

    out = gnn_encoder(x, edge_index, params)
    out = jax.block_until_ready(out)

    ref = reference(x, edge_index, params)
    assert out.shape == (num_nodes, out_channels)
    # A is exact int8, normalization/accumulation stay f32; remaining error is
    # only bf16 streaming of Z / X / H / weights.
    assert jnp.allclose(out, ref, atol=5e-2, rtol=5e-2), float(jnp.max(jnp.abs(out - ref)))

    print("KERNEL_OK")
</pallas_src>

<mosaic_0001>
module attributes {stable_mosaic.version = 11 : i64} {
  func.func @_sage_layer_kernel(%arg0: i32, %arg1: i32, %arg2: memref<128x128xi8, #tpu.memory_space<vmem>>, %arg3: memref<128x128xbf16, #tpu.memory_space<vmem>>, %arg4: memref<128x128xbf16, #tpu.memory_space<vmem>>, %arg5: memref<128x1xf32, #tpu.memory_space<vmem>>, %arg6: memref<128x128xbf16, #tpu.memory_space<vmem>>, %arg7: memref<1x128xf32, #tpu.memory_space<vmem>>, %arg8: memref<128x128xbf16, #tpu.memory_space<vmem>>, %arg9: memref<128x128xf32, #tpu.memory_space<vmem>>) attributes {dimension_semantics = [#tpu.dimension_semantics<parallel>, #tpu.dimension_semantics<arbitrary>], iteration_bounds = array<i64: 1, 1>, scalar_prefetch = 0 : i64, scratch_operands = 1 : i64, tpu.core_type = #tpu.core_type<tc>, window_params = [{transform_indices = @transform_0, window_bounds = array<i64: 128, 128>}, {transform_indices = @transform_1, window_bounds = array<i64: 128, 128>}, {transform_indices = @transform_2, window_bounds = array<i64: 128, 128>}, {transform_indices = @transform_3, window_bounds = array<i64: 128, 1>}, {pipeline_mode = #tpu.pipeline_mode<synchronous>, transform_indices = @transform_4, window_bounds = array<i64: 128, 128>}, {pipeline_mode = #tpu.pipeline_mode<synchronous>, transform_indices = @transform_5, window_bounds = array<i64: 1, 128>}, {transform_indices = @transform_6, window_bounds = array<i64: 128, 128>}]} {
    %c0_i32 = arith.constant 0 : i32
    %0 = arith.cmpi eq, %arg1, %c0_i32 : i32
    %1 = arith.extui %0 : i1 to i32
    %c0_i32_0 = arith.constant 0 : i32
    %2 = arith.cmpi ne, %1, %c0_i32_0 : i32
    scf.if %2 {
      %cst_10 = arith.constant 0.000000e+00 : f32
      %13 = vector.broadcast %cst_10 : f32 to vector<128x128xf32>
      %c0_11 = arith.constant 0 : index
      %c0_12 = arith.constant 0 : index
      %14 = vector.load %arg9[%c0_11, %c0_12] : memref<128x128xf32, #tpu.memory_space<vmem>>, vector<128x128xf32>
      tpu.vector_store %arg9[%c0_11, %c0_12], %13 {strides = array<i32>} : memref<128x128xf32, #tpu.memory_space<vmem>>, vector<128x128xf32>,
    } else {
    }
    %c0 = arith.constant 0 : index
    %c0_1 = arith.constant 0 : index
    %3 = vector.load %arg9[%c0, %c0_1] : memref<128x128xf32, #tpu.memory_space<vmem>>, vector<128x128xf32>
    %c0_2 = arith.constant 0 : index
    %c0_3 = arith.constant 0 : index
    %4 = vector.load %arg2[%c0_2, %c0_3] : memref<128x128xi8, #tpu.memory_space<vmem>>, vector<128x128xi8>
    %5 = arith.sitofp %4 : vector<128x128xi8> to vector<128x128xbf16>
    %c0_4 = arith.constant 0 : index
    %c0_5 = arith.constant 0 : index
    %6 = vector.load %arg3[%c0_4, %c0_5] : memref<128x128xbf16, #tpu.memory_space<vmem>>, vector<128x128xbf16>
    %cst = arith.constant dense<0.000000e+00> : vector<128x128xf32>
    %7 = tpu.matmul %5, %6, %cst {dimension_numbers = #tpu.dot_dimension_numbers<[1], [0], [0], [1], [0, 0, 1, 1], [], []>} : vector<128x128xbf16>, vector<128x128xbf16>, vector<128x128xf32> -> vector<128x128xf32>
    %8 = arith.addf %3, %7 : vector<128x128xf32>
    %c0_6 = arith.constant 0 : index
    %c0_7 = arith.constant 0 : index
    %9 = vector.load %arg9[%c0_6, %c0_7] : memref<128x128xf32, #tpu.memory_space<vmem>>, vector<128x128xf32>
    tpu.vector_store %arg9[%c0_6, %c0_7], %8 {strides = array<i32>} : memref<128x128xf32, #tpu.memory_space<vmem>>, vector<128x128xf32>,
    %c0_i32_8 = arith.constant 0 : i32
    %10 = arith.cmpi eq, %arg1, %c0_i32_8 : i32
    %11 = arith.extui %10 : i1 to i32
    %c0_i32_9 = arith.constant 0 : i32
    %12 = arith.cmpi ne, %11, %c0_i32_9 : i32
    scf.if %12 {
      %c0_10 = arith.constant 0 : index
      %c0_11 = arith.constant 0 : index
      %13 = vector.load %arg9[%c0_10, %c0_11] : memref<128x128xf32, #tpu.memory_space<vmem>>, vector<128x128xf32>
      %c0_12 = arith.constant 0 : index
      %c0_13 = arith.constant 0 : index
      %14 = vector.load %arg5[%c0_12, %c0_13] : memref<128x1xf32, #tpu.memory_space<vmem>>, vector<128x1xf32>
      %15 = vector.broadcast %14 : vector<128x1xf32> to vector<128x128xf32>
      %16 = arith.mulf %13, %15 : vector<128x128xf32>
      %c0_14 = arith.constant 0 : index
      %c0_15 = arith.constant 0 : index
      %17 = vector.load %arg4[%c0_14, %c0_15] : memref<128x128xbf16, #tpu.memory_space<vmem>>, vector<128x128xbf16>
      %c0_16 = arith.constant 0 : index
      %c0_17 = arith.constant 0 : index
      %18 = vector.load %arg6[%c0_16, %c0_17] : memref<128x128xbf16, #tpu.memory_space<vmem>>, vector<128x128xbf16>
      %cst_18 = arith.constant dense<0.000000e+00> : vector<128x128xf32>
      %19 = tpu.matmul %17, %18, %cst_18 {dimension_numbers = #tpu.dot_dimension_numbers<[1], [0], [0], [1], [0, 0, 1, 1], [], []>} : vector<128x128xbf16>, vector<128x128xbf16>, vector<128x128xf32> -> vector<128x128xf32>
      %20 = arith.addf %16, %19 : vector<128x128xf32>
      %c0_19 = arith.constant 0 : index
      %c0_20 = arith.constant 0 : index
      %21 = vector.load %arg7[%c0_19, %c0_20] : memref<1x128xf32, #tpu.memory_space<vmem>>, vector<1x128xf32>
      %22 = vector.broadcast %21 : vector<1x128xf32> to vector<128x128xf32>
      %23 = arith.addf %20, %22 : vector<128x128xf32>
      %cst_21 = arith.constant 0.000000e+00 : f32
      %24 = vector.broadcast %cst_21 : f32 to vector<128x128xf32>
      %25 = arith.maximumf %23, %24 : vector<128x128xf32>
      %26 = arith.truncf %25 : vector<128x128xf32> to vector<128x128xbf16>
      %c0_22 = arith.constant 0 : index
      %c0_23 = arith.constant 0 : index
      %27 = vector.load %arg8[%c0_22, %c0_23] : memref<128x128xbf16, #tpu.memory_space<vmem>>, vector<128x128xbf16>
      tpu.vector_store %arg8[%c0_22, %c0_23], %26 {strides = array<i32>} : memref<128x128xbf16, #tpu.memory_space<vmem>>, vector<128x128xbf16>,
    } else {
    }
    return
  }
  func.func @transform_0(%arg0: i32, %arg1: i32) -> (i32, i32) {
    %c0_i32 = arith.constant 0 : i32
    return %arg0, %arg1 : i32, i32
  }
  func.func @transform_1(%arg0: i32, %arg1: i32) -> (i32, i32) {
    %c0_i32 = arith.constant 0 : i32
    %c0_i32_0 = arith.constant 0 : i32
    return %arg1, %c0_i32 : i32, i32
  }
  func.func @transform_2(%arg0: i32, %arg1: i32) -> (i32, i32) {
    %c0_i32 = arith.constant 0 : i32
    %c0_i32_0 = arith.constant 0 : i32
    return %arg0, %c0_i32 : i32, i32
  }
  func.func @transform_3(%arg0: i32, %arg1: i32) -> (i32, i32) {
    %c0_i32 = arith.constant 0 : i32
    %c0_i32_0 = arith.constant 0 : i32
    return %arg0, %c0_i32 : i32, i32
  }
  func.func @transform_4(%arg0: i32, %arg1: i32) -> (i32, i32) {
    %c0_i32 = arith.constant 0 : i32
    %c0_i32_0 = arith.constant 0 : i32
    %c0_i32_1 = arith.constant 0 : i32
    return %c0_i32, %c0_i32_0 : i32, i32
  }
  func.func @transform_5(%arg0: i32, %arg1: i32) -> (i32, i32) {
    %c0_i32 = arith.constant 0 : i32
    %c0_i32_0 = arith.constant 0 : i32
    %c0_i32_1 = arith.constant 0 : i32
    return %c0_i32, %c0_i32_0 : i32, i32
  }
  func.func @transform_6(%arg0: i32, %arg1: i32) -> (i32, i32) {
    %c0_i32 = arith.constant 0 : i32
    %c0_i32_0 = arith.constant 0 : i32
    return %arg0, %c0_i32 : i32, i32
  }
}

</mosaic_0001>

<llo_original>
// kernel: tpu_custom_call.1
$region0: #{tpu_custom_call.1}
  #allocation0 [shape = 'u32[]', space=smem, size = 0x4, offset = 0x4, fixed_abs, tag = 'smem constant byte address 0x4 - core index']
  #allocation1 [shape = 'u32[72,128]{1,0:T(1,128)}', space=vmem, size = 0x9000, scoped, tag = 'internal scratch']
  #allocation2 [shape = 'f32[128,128]{1,0:T(8,128)}', space=vmem, size = 0x10000, scoped, tag = 'scratch operand']
  %s0 = inlined_call_operand.hbm [shape: s8[128,128], index: 0, kind: input, shape index: {}]
  %s1 = inlined_call_operand.vmem [shape: bf16[128,128], index: 1, kind: input, shape index: {}]
  %s2 = inlined_call_operand.vmem [shape: bf16[128,128], index: 2, kind: input, shape index: {}]
  %s3 = inlined_call_operand.vmem [shape: f32[128,1], index: 3, kind: input, shape index: {}]
  %s4 = inlined_call_operand.hbm [shape: bf16[128,128], index: 4, kind: input, shape index: {}]
  %s5 = inlined_call_operand.vmem [shape: f32[1,128], index: 5, kind: input, shape index: {}]
  %s6 = inlined_call_operand.hbm [shape: bf16[128,128], index: 6, kind: output, shape index: {}]
  %s7 = sld [smem:[#allocation0]]
  $region50: #{tpu_custom_call.1} parent=0
    _
  %s9 = ssub.s32 1, %s7
  %s10 = scalar_select 0, %s9, %s7
  $region1: #{tpu_custom_call.1} parent=0
    #allocation3 [shape = 'u8[16384]{0}', space=vmem, size = 0x4000, scoped, tag = 'input window, operand 0, single buffered']
    #allocation4 [shape = 's32[1]{0}', space=sflag, size = 0x4, scoped, tag = 'scoped memory for tpu_custom_call.1']
    #allocation5 [shape = 's32[1]{0}', space=sflag, size = 0x4, scoped, tag = 'scoped memory for tpu_custom_call.1']
    #allocation6 [shape = 'u8[32768]{0}', space=vmem, size = 0x8000, scoped, tag = 'input window, operand 4, single buffered']
    #allocation7 [shape = 's32[1]{0}', space=sflag, size = 0x4, scoped, tag = 'scoped memory for tpu_custom_call.1']
    #allocation8 [shape = 'u8[32768]{0}', space=vmem, size = 0x8000, scoped, tag = 'output window, operand 0, single buffered']
    %11 = vsyncpa [#allocation4], 0
    %12 = vsyncpa [#allocation7], 0
    %13 = vsyncpa [#allocation5], 0
    // Predicated region
    $region2: #{tpu_custom_call.1} parent=1 // pred_check
      _
    $region3: #{tpu_custom_call.1} parent=1 // pred_check_branch
      %15 = sbr.rel (0) target = $region5
    $region4: #{tpu_custom_call.1} parent=1 // pred_region
      %17 = vsyncadd [#allocation4], 0
      %s18 = sshll.u32 %s0, 4
      %s19 = int_to_ptr.hbm [resolvable:$true] %s18
      %s20 = sshll.u32 [#allocation3], 4
      %s21 = int_to_ptr.vmem [resolvable:$true] %s20
      %26 = dma.hbm_to_vmem [thread:$0]  %s19, 512, %s21, [#allocation4], 128, 128, 8
    $region5: #{tpu_custom_call.1} parent=1 // pred_fallthru
      _
    // Predicated region
    $region6: #{tpu_custom_call.1} parent=1 // pred_check
      _
    $region7: #{tpu_custom_call.1} parent=1 // pred_check_branch
      %28 = sbr.rel (0) target = $region9
    $region8: #{tpu_custom_call.1} parent=1 // pred_region
      _
    $region9: #{tpu_custom_call.1} parent=1 // pred_fallthru
      _
    // Predicated region
    $region10: #{tpu_custom_call.1} parent=1 // pred_check
      _
    $region11: #{tpu_custom_call.1} parent=1 // pred_check_branch
      %30 = sbr.rel (0) target = $region13
    $region12: #{tpu_custom_call.1} parent=1 // pred_region
      _
    $region13: #{tpu_custom_call.1} parent=1 // pred_fallthru
      _
    // Predicated region
    $region14: #{tpu_custom_call.1} parent=1 // pred_check
      _
    $region15: #{tpu_custom_call.1} parent=1 // pred_check_branch
      %32 = sbr.rel (0) target = $region17
    $region16: #{tpu_custom_call.1} parent=1 // pred_region
      _
    $region17: #{tpu_custom_call.1} parent=1 // pred_fallthru
      _
    // Predicated region
    $region18: #{tpu_custom_call.1} parent=1 // pred_check
      _
    $region19: #{tpu_custom_call.1} parent=1 // pred_check_branch
      %34 = sbr.rel (0) target = $region21
    $region20: #{tpu_custom_call.1} parent=1 // pred_region
      %36 = vsyncadd [#allocation7], 0
      %s37 = sshll.u32 %s4, 4
      %s38 = int_to_ptr.hbm [resolvable:$true] %s37
      %s39 = sshll.u32 [#allocation6], 4
      %s40 = int_to_ptr.vmem [resolvable:$true] %s39
      %45 = dma.hbm_to_vmem [thread:$0]  %s38, 1024, %s40, [#allocation7], 64, 64, 4
    $region21: #{tpu_custom_call.1} parent=1 // pred_fallthru
      _
    // Predicated region
    $region22: #{tpu_custom_call.1} parent=1 // pred_check
      _
    $region23: #{tpu_custom_call.1} parent=1 // pred_check_branch
      %47 = sbr.rel (0) target = $region25
    $region24: #{tpu_custom_call.1} parent=1 // pred_region
      _
    $region25: #{tpu_custom_call.1} parent=1 // pred_fallthru
      _
    // Predicated region
    $region26: #{tpu_custom_call.1} parent=1 // pred_check
      _
    $region27: #{tpu_custom_call.1} parent=1 // pred_check_branch
      %49 = sbr.rel (0) target = $region29
    $region28: #{tpu_custom_call.1} parent=1 // pred_region
      %51 = dma.done [#allocation4], 512
    $region29: #{tpu_custom_call.1} parent=1 // pred_fallthru
      _
    // Predicated region
    $region30: #{tpu_custom_call.1} parent=1 // pred_check
      _
    $region31: #{tpu_custom_call.1} parent=1 // pred_check_branch
      %53 = sbr.rel (0) target = $region33
    $region32: #{tpu_custom_call.1} parent=1 // pred_region
      %55 = dma.done [#allocation7], 1024
    $region33: #{tpu_custom_call.1} parent=1 // pred_fallthru
      _
    %p56 = scmp.eq.s32.totalorder 0, 0
    // Predicated region
    $region34: #{tpu_custom_call.1} parent=1 // pred_check
      %p57 = pneg %p56
    $region35: #{tpu_custom_call.1} parent=1 // pred_check_branch
      %59 = sbr.rel (%p57) target = $region37
    $region36: #{tpu_custom_call.1} parent=1 // pred_region
      %60 = vst [vmem:[#allocation2] sm:$0xff] 0.0
      %61 = vst [vmem:[#allocation2 + $0x8] sm:$0xff] 0.0
      %62 = vst [vmem:[#allocation2 + $0x10] sm:$0xff] 0.0
      %63 = vst [vmem:[#allocation2 + $0x18] sm:$0xff] 0.0
      %64 = vst [vmem:[#allocation2 + $0x20] sm:$0xff] 0.0
      %65 = vst [vmem:[#allocation2 + $0x28] sm:$0xff] 0.0
      %66 = vst [vmem:[#allocation2 + $0x30] sm:$0xff] 0.0
      %67 = vst [vmem:[#allocation2 + $0x38] sm:$0xff] 0.0
      %68 = vst [vmem:[#allocation2 + $0x40] sm:$0xff] 0.0
      %69 = vst [vmem:[#allocation2 + $0x48] sm:$0xff] 0.0
      %70 = vst [vmem:[#allocation2 + $0x50] sm:$0xff] 0.0
      %71 = vst [vmem:[#allocation2 + $0x58] sm:$0xff] 0.0
      %72 = vst [vmem:[#allocation2 + $0x60] sm:$0xff] 0.0
      %73 = vst [vmem:[#allocation2 + $0x68] sm:$0xff] 0.0
      %74 = vst [vmem:[#allocation2 + $0x70] sm:$0xff] 0.0
      %75 = vst [vmem:[#allocation2 + $0x78] sm:$0xff] 0.0
    $region37: #{tpu_custom_call.1} parent=1 // pred_fallthru
      _
    %v76 = vld [vmem:[#allocation2] sm:$0xff]
    %v77 = vld [vmem:[#allocation2 + $0x8] sm:$0xff]
    %v78 = vld [vmem:[#allocation2 + $0x10] sm:$0xff]
    %v79 = vld [vmem:[#allocation2 + $0x18] sm:$0xff]
    %v80 = vld [vmem:[#allocation2 + $0x20] sm:$0xff]
    %v81 = vld [vmem:[#allocation2 + $0x28] sm:$0xff]
    %v82 = vld [vmem:[#allocation2 + $0x30] sm:$0xff]
    %v83 = vld [vmem:[#allocation2 + $0x38] sm:$0xff]
    %v84 = vld [vmem:[#allocation2 + $0x40] sm:$0xff]
    %v85 = vld [vmem:[#allocation2 + $0x48] sm:$0xff]
    %v86 = vld [vmem:[#allocation2 + $0x50] sm:$0xff]
    %v87 = vld [vmem:[#allocation2 + $0x58] sm:$0xff]
    %v88 = vld [vmem:[#allocation2 + $0x60] sm:$0xff]
    %v89 = vld [vmem:[#allocation2 + $0x68] sm:$0xff]
    %v90 = vld [vmem:[#allocation2 + $0x70] sm:$0xff]
    %v91 = vld [vmem:[#allocation2 + $0x78] sm:$0xff]
    %v92 = vld [vmem:[#allocation3] sm:$0xff]
    %v93 = vld [vmem:[#allocation3 + $0x8] sm:$0xff]
    %v94 = vld [vmem:[#allocation3 + $0x10] sm:$0xff]
    %v95 = vld [vmem:[#allocation3 + $0x18] sm:$0xff]
    %v96 = vunpack.c.0.s8 %v92
    %v97 = vunpack.c.1.s8 %v92
    %v98 = vunpack.c.2.s8 %v92
    %v99 = vunpack.c.3.s8 %v92
    %v100 = vunpack.c.0.s8 %v93
    %v101 = vunpack.c.1.s8 %v93
    %v102 = vunpack.c.2.s8 %v93
    %v103 = vunpack.c.3.s8 %v93
    %v104 = vunpack.c.0.s8 %v94
    %v105 = vunpack.c.1.s8 %v94
    %v106 = vunpack.c.2.s8 %v94
    %v107 = vunpack.c.3.s8 %v94
    %v108 = vunpack.c.0.s8 %v95
    %v109 = vunpack.c.1.s8 %v95
    %v110 = vunpack.c.2.s8 %v95
    %v111 = vunpack.c.3.s8 %v95
    %v112 = vcvt.s32.f32 %v96
    %v113 = vcvt.s32.f32 %v97
    %v114 = vcvt.s32.f32 %v98
    %v115 = vcvt.s32.f32 %v99
    %v116 = vcvt.s32.f32 %v100
    %v117 = vcvt.s32.f32 %v101
    %v118 = vcvt.s32.f32 %v102
    %v119 = vcvt.s32.f32 %v103
    %v120 = vcvt.s32.f32 %v104
    %v121 = vcvt.s32.f32 %v105
    %v122 = vcvt.s32.f32 %v106
    %v123 = vcvt.s32.f32 %v107
    %v124 = vcvt.s32.f32 %v108
    %v125 = vcvt.s32.f32 %v109
    %v126 = vcvt.s32.f32 %v110
    %v127 = vcvt.s32.f32 %v111
    %v128 = vpack.c.bf16 %v113, %v112
    %v129 = vpack.c.bf16 %v115, %v114
    %v130 = vpack.c.bf16 %v117, %v116
    %v131 = vpack.c.bf16 %v119, %v118
    %v132 = vpack.c.bf16 %v121, %v120
    %v133 = vpack.c.bf16 %v123, %v122
    %v134 = vpack.c.bf16 %v125, %v124
    %v135 = vpack.c.bf16 %v127, %v126
    %v136 = vld [vmem:[%s1] sm:$0xf]
    %v137 = vld [vmem:[%s1 + $0x4] sm:$0xf]
    %v138 = vld [vmem:[%s1 + $0x8] sm:$0xf]
    %v139 = vld [vmem:[%s1 + $0xc] sm:$0xf]
    %v140 = vld [vmem:[%s1 + $0x10] sm:$0xf]
    %v141 = vld [vmem:[%s1 + $0x14] sm:$0xf]
    %v142 = vld [vmem:[%s1 + $0x18] sm:$0xf]
    %v143 = vld [vmem:[%s1 + $0x1c] sm:$0xf]
    %v144 = vld [vmem:[%s1 + $0x20] sm:$0xf]
    %v145 = vld [vmem:[%s1 + $0x24] sm:$0xf]
    %v146 = vld [vmem:[%s1 + $0x28] sm:$0xf]
    %v147 = vld [vmem:[%s1 + $0x2c] sm:$0xf]
    %v148 = vld [vmem:[%s1 + $0x30] sm:$0xf]
    %v149 = vld [vmem:[%s1 + $0x34] sm:$0xf]
    %v150 = vld [vmem:[%s1 + $0x38] sm:$0xf]
    %v151 = vld [vmem:[%s1 + $0x3c] sm:$0xf]
    %v168 = vunpack.c.l.b16 %v136
    %v169 = vunpack.c.l.b16 %v137
    %v170 = vunpack.c.l.b16 %v138
    %v171 = vunpack.c.l.b16 %v139
    %v172 = vunpack.c.l.b16 %v140
    %v173 = vunpack.c.l.b16 %v141
    %v174 = vunpack.c.l.b16 %v142
    %v175 = vunpack.c.l.b16 %v143
    %v176 = vunpack.c.l.b16 %v144
    %v177 = vunpack.c.l.b16 %v145
    %v178 = vunpack.c.l.b16 %v146
    %v179 = vunpack.c.l.b16 %v147
    %v180 = vunpack.c.l.b16 %v148
    %v181 = vunpack.c.l.b16 %v149
    %v182 = vunpack.c.l.b16 %v150
    %v183 = vunpack.c.l.b16 %v151
    %v184 = vpack.c.b16 %v169, %v168
    %v185 = vpack.c.b16 %v171, %v170
    %v186 = vpack.c.b16 %v173, %v172
    %v187 = vpack.c.b16 %v175, %v174
    %v188 = vpack.c.b16 %v177, %v176
    %v189 = vpack.c.b16 %v179, %v178
    %v190 = vpack.c.b16 %v181, %v180
    %v191 = vpack.c.b16 %v183, %v182
    %200 = vmatpush.bf16.msra.mxu0 %v191
    %201 = vmatpush.bf16.msra.mxu0 %v190
    %202 = vmatpush.bf16.msra.mxu0 %v189
    %203 = vmatpush.bf16.msra.mxu0 %v188
    %204 = vmatpush.bf16.msra.mxu0 %v187
    %205 = vmatpush.bf16.msra.mxu0 %v186
    %206 = vmatpush.bf16.msra.mxu0 %v185
    %207 = vmatpush.bf16.msra.mxu0 %v184
    %208 = vmatmul.bf16.gmra.mxu0 %v128
    %v209 = vpop.f32.mrf.mxu0
    %v210 = vadd.f32 0.0, %v209
    %v211 = vpop.f32.mrf.mxu0
    %v212 = vadd.f32 0.0, %v211
    %213 = vmatmul.bf16.gmra.mxu0 %v129
    %v214 = vpop.f32.mrf.mxu0
    %v215 = vadd.f32 0.0, %v214
    %v216 = vpop.f32.mrf.mxu0
    %v217 = vadd.f32 0.0, %v216
    %218 = vmatmul.bf16.gmra.mxu0 %v130
    %v219 = vpop.f32.mrf.mxu0
    %v220 = vadd.f32 0.0, %v219
    %v221 = vpop.f32.mrf.mxu0
    %v222 = vadd.f32 0.0, %v221
    %223 = vmatmul.bf16.gmra.mxu0 %v131
    %v224 = vpop.f32.mrf.mxu0
    %v225 = vadd.f32 0.0, %v224
    %v226 = vpop.f32.mrf.mxu0
    %v227 = vadd.f32 0.0, %v226
    %228 = vmatmul.bf16.gmra.mxu0 %v132
    %v229 = vpop.f32.mrf.mxu0
    %v230 = vadd.f32 0.0, %v229
    %v231 = vpop.f32.mrf.mxu0
    %v232 = vadd.f32 0.0, %v231
    %233 = vmatmul.bf16.gmra.mxu0 %v133
    %v234 = vpop.f32.mrf.mxu0
    %v235 = vadd.f32 0.0, %v234
    %v236 = vpop.f32.mrf.mxu0
    %v237 = vadd.f32 0.0, %v236
    %238 = vmatmul.bf16.gmra.mxu0 %v134
    %v239 = vpop.f32.mrf.mxu0
    %v240 = vadd.f32 0.0, %v239
    %v241 = vpop.f32.mrf.mxu0
    %v242 = vadd.f32 0.0, %v241
    %243 = vmatmul.bf16.gmra.mxu0 %v135
    %v244 = vpop.f32.mrf.mxu0
    %v245 = vadd.f32 0.0, %v244
    %v246 = vpop.f32.mrf.mxu0
    %v247 = vadd.f32 0.0, %v246
    %248 = vdwg.mxu0
    %v249 = vadd.f32 %v76, %v210
    %v250 = vadd.f32 %v77, %v212
    %v251 = vadd.f32 %v78, %v215
    %v252 = vadd.f32 %v79, %v217
    %v253 = vadd.f32 %v80, %v220
    %v254 = vadd.f32 %v81, %v222
    %v255 = vadd.f32 %v82, %v225
    %v256 = vadd.f32 %v83, %v227
    %v257 = vadd.f32 %v84, %v230
    %v258 = vadd.f32 %v85, %v232
    %v259 = vadd.f32 %v86, %v235
    %v260 = vadd.f32 %v87, %v237
    %v261 = vadd.f32 %v88, %v240
    %v262 = vadd.f32 %v89, %v242
    %v263 = vadd.f32 %v90, %v245
    %v264 = vadd.f32 %v91, %v247
    %265 = vst [vmem:[#allocation2] sm:$0xff] %v249
    %266 = vst [vmem:[#allocation2 + $0x8] sm:$0xff] %v250
    %267 = vst [vmem:[#allocation2 + $0x10] sm:$0xff] %v251
    %268 = vst [vmem:[#allocation2 + $0x18] sm:$0xff] %v252
    %269 = vst [vmem:[#allocation2 + $0x20] sm:$0xff] %v253
    %270 = vst [vmem:[#allocation2 + $0x28] sm:$0xff] %v254
    %271 = vst [vmem:[#allocation2 + $0x30] sm:$0xff] %v255
    %272 = vst [vmem:[#allocation2 + $0x38] sm:$0xff] %v256
    %273 = vst [vmem:[#allocation2 + $0x40] sm:$0xff] %v257
    %274 = vst [vmem:[#allocation2 + $0x48] sm:$0xff] %v258
    %275 = vst [vmem:[#allocation2 + $0x50] sm:$0xff] %v259
    %276 = vst [vmem:[#allocation2 + $0x58] sm:$0xff] %v260
    %277 = vst [vmem:[#allocation2 + $0x60] sm:$0xff] %v261
    %278 = vst [vmem:[#allocation2 + $0x68] sm:$0xff] %v262
    %279 = vst [vmem:[#allocation2 + $0x70] sm:$0xff] %v263
    %280 = vst [vmem:[#allocation2 + $0x78] sm:$0xff] %v264
    // Predicated region
    $region38: #{tpu_custom_call.1} parent=1 // pred_check
      %p281 = pneg %p56
    $region39: #{tpu_custom_call.1} parent=1 // pred_check_branch
      %283 = sbr.rel (%p281) target = $region41
    $region40: #{tpu_custom_call.1} parent=1 // pred_region
      %v284 = vld [vmem:[#allocation2] sm:$0xff]
      %v285 = vld [vmem:[#allocation2 + $0x8] sm:$0xff]
      %v286 = vld [vmem:[#allocation2 + $0x10] sm:$0xff]
      %v287 = vld [vmem:[#allocation2 + $0x18] sm:$0xff]
      %v288 = vld [vmem:[#allocation2 + $0x20] sm:$0xff]
      %v289 = vld [vmem:[#allocation2 + $0x28] sm:$0xff]
      %v290 = vld [vmem:[#allocation2 + $0x30] sm:$0xff]
      %v291 = vld [vmem:[#allocation2 + $0x38] sm:$0xff]
      %v292 = vld [vmem:[#allocation2 + $0x40] sm:$0xff]
      %v293 = vld [vmem:[#allocation2 + $0x48] sm:$0xff]
      %v294 = vld [vmem:[#allocation2 + $0x50] sm:$0xff]
      %v295 = vld [vmem:[#allocation2 + $0x58] sm:$0xff]
      %v296 = vld [vmem:[#allocation2 + $0x60] sm:$0xff]
      %v297 = vld [vmem:[#allocation2 + $0x68] sm:$0xff]
      %v298 = vld [vmem:[#allocation2 + $0x70] sm:$0xff]
      %v299 = vld [vmem:[#allocation2 + $0x78] sm:$0xff]
      %v300 = vld [vmem:[%s3] sm:$0xff]
      %v301 = vld [vmem:[%s3 + $0x8] sm:$0xff]
      %v302 = vld [vmem:[%s3 + $0x10] sm:$0xff]
      %v303 = vld [vmem:[%s3 + $0x18] sm:$0xff]
      %v304 = vld [vmem:[%s3 + $0x20] sm:$0xff]
      %v305 = vld [vmem:[%s3 + $0x28] sm:$0xff]
      %v306 = vld [vmem:[%s3 + $0x30] sm:$0xff]
      %v307 = vld [vmem:[%s3 + $0x38] sm:$0xff]
      %v308 = vld [vmem:[%s3 + $0x40] sm:$0xff]
      %v309 = vld [vmem:[%s3 + $0x48] sm:$0xff]
      %v310 = vld [vmem:[%s3 + $0x50] sm:$0xff]
      %v311 = vld [vmem:[%s3 + $0x58] sm:$0xff]
      %v312 = vld [vmem:[%s3 + $0x60] sm:$0xff]
      %v313 = vld [vmem:[%s3 + $0x68] sm:$0xff]
      %v314 = vld [vmem:[%s3 + $0x70] sm:$0xff]
      %v315 = vld [vmem:[%s3 + $0x78] sm:$0xff]
      %317 = vset.pattern.permute.xlu0 0
      %318 = vperm.xlu0 %317, %v300
      %v319 = vpop.permute.xlu0 %318
      %322 = vset.pattern.permute.xlu0 0
      %323 = vperm.xlu0 %322, %v301
      %v324 = vpop.permute.xlu0 %323
      %327 = vset.pattern.permute.xlu0 0
      %328 = vperm.xlu0 %327, %v302
      %v329 = vpop.permute.xlu0 %328
      %332 = vset.pattern.permute.xlu0 0
      %333 = vperm.xlu0 %332, %v303
      %v334 = vpop.permute.xlu0 %333
      %337 = vset.pattern.permute.xlu0 0
      %338 = vperm.xlu0 %337, %v304
      %v339 = vpop.permute.xlu0 %338
      %342 = vset.pattern.permute.xlu0 0
      %343 = vperm.xlu0 %342, %v305
      %v344 = vpop.permute.xlu0 %343
      %347 = vset.pattern.permute.xlu0 0
      %348 = vperm.xlu0 %347, %v306
      %v349 = vpop.permute.xlu0 %348
      %352 = vset.pattern.permute.xlu0 0
      %353 = vperm.xlu0 %352, %v307
      %v354 = vpop.permute.xlu0 %353
      %357 = vset.pattern.permute.xlu0 0
      %358 = vperm.xlu0 %357, %v308
      %v359 = vpop.permute.xlu0 %358
      %362 = vset.pattern.permute.xlu0 0
      %363 = vperm.xlu0 %362, %v309
      %v364 = vpop.permute.xlu0 %363
      %367 = vset.pattern.permute.xlu0 0
      %368 = vperm.xlu0 %367, %v310
      %v369 = vpop.permute.xlu0 %368
      %372 = vset.pattern.permute.xlu0 0
      %373 = vperm.xlu0 %372, %v311
      %v374 = vpop.permute.xlu0 %373
      %377 = vset.pattern.permute.xlu0 0
      %378 = vperm.xlu0 %377, %v312
      %v379 = vpop.permute.xlu0 %378
      %382 = vset.pattern.permute.xlu0 0
      %383 = vperm.xlu0 %382, %v313
      %v384 = vpop.permute.xlu0 %383
      %387 = vset.pattern.permute.xlu0 0
      %388 = vperm.xlu0 %387, %v314
      %v389 = vpop.permute.xlu0 %388
      %392 = vset.pattern.permute.xlu0 0
      %393 = vperm.xlu0 %392, %v315
      %v394 = vpop.permute.xlu0 %393
      %v396 = vmul.f32 %v284, %v319
      %v397 = vmul.f32 %v285, %v324
      %v398 = vmul.f32 %v286, %v329
      %v399 = vmul.f32 %v287, %v334
      %v400 = vmul.f32 %v288, %v339
      %v401 = vmul.f32 %v289, %v344
      %v402 = vmul.f32 %v290, %v349
      %v403 = vmul.f32 %v291, %v354
      %v404 = vmul.f32 %v292, %v359
      %v405 = vmul.f32 %v293, %v364
      %v406 = vmul.f32 %v294, %v369
      %v407 = vmul.f32 %v295, %v374
      %v408 = vmul.f32 %v296, %v379
      %v409 = vmul.f32 %v297, %v384
      %v410 = vmul.f32 %v298, %v389
      %v411 = vmul.f32 %v299, %v394
      %v412 = vld [vmem:[%s2] sm:$0xf]
      %v413 = vld [vmem:[%s2 + $0x4] sm:$0xf]
      %v414 = vld [vmem:[%s2 + $0x8] sm:$0xf]
      %v415 = vld [vmem:[%s2 + $0xc] sm:$0xf]
      %v416 = vld [vmem:[%s2 + $0x10] sm:$0xf]
      %v417 = vld [vmem:[%s2 + $0x14] sm:$0xf]
      %v418 = vld [vmem:[%s2 + $0x18] sm:$0xf]
      %v419 = vld [vmem:[%s2 + $0x1c] sm:$0xf]
      %v420 = vld [vmem:[%s2 + $0x20] sm:$0xf]
      %v421 = vld [vmem:[%s2 + $0x24] sm:$0xf]
      %v422 = vld [vmem:[%s2 + $0x28] sm:$0xf]
      %v423 = vld [vmem:[%s2 + $0x2c] sm:$0xf]
      %v424 = vld [vmem:[%s2 + $0x30] sm:$0xf]
      %v425 = vld [vmem:[%s2 + $0x34] sm:$0xf]
      %v426 = vld [vmem:[%s2 + $0x38] sm:$0xf]
      %v427 = vld [vmem:[%s2 + $0x3c] sm:$0xf]
      %v428 = vld [vmem:[#allocation6] sm:$0xf]
      %v429 = vld [vmem:[#allocation6 + $0x4] sm:$0xf]
      %v430 = vld [vmem:[#allocation6 + $0x8] sm:$0xf]
      %v431 = vld [vmem:[#allocation6 + $0xc] sm:$0xf]
      %v432 = vld [vmem:[#allocation6 + $0x10] sm:$0xf]
      %v433 = vld [vmem:[#allocation6 + $0x14] sm:$0xf]
      %v434 = vld [vmem:[#allocation6 + $0x18] sm:$0xf]
      %v435 = vld [vmem:[#allocation6 + $0x1c] sm:$0xf]
      %v436 = vld [vmem:[#allocation6 + $0x20] sm:$0xf]
      %v437 = vld [vmem:[#allocation6 + $0x24] sm:$0xf]
      %v438 = vld [vmem:[#allocation6 + $0x28] sm:$0xf]
      %v439 = vld [vmem:[#allocation6 + $0x2c] sm:$0xf]
      %v440 = vld [vmem:[#allocation6 + $0x30] sm:$0xf]
      %v441 = vld [vmem:[#allocation6 + $0x34] sm:$0xf]
      %v442 = vld [vmem:[#allocation6 + $0x38] sm:$0xf]
      %v443 = vld [vmem:[#allocation6 + $0x3c] sm:$0xf]
      %v460 = vunpack.c.l.b16 %v412
      %v461 = vunpack.c.l.b16 %v413
      %v462 = vunpack.c.l.b16 %v414
      %v463 = vunpack.c.l.b16 %v415
      %v464 = vunpack.c.l.b16 %v416
      %v465 = vunpack.c.l.b16 %v417
      %v466 = vunpack.c.l.b16 %v418
      %v467 = vunpack.c.l.b16 %v419
      %v468 = vunpack.c.l.b16 %v420
      %v469 = vunpack.c.l.b16 %v421
      %v470 = vunpack.c.l.b16 %v422
      %v471 = vunpack.c.l.b16 %v423
      %v472 = vunpack.c.l.b16 %v424
      %v473 = vunpack.c.l.b16 %v425
      %v474 = vunpack.c.l.b16 %v426
      %v475 = vunpack.c.l.b16 %v427
      %v476 = vpack.c.b16 %v461, %v460
      %v477 = vpack.c.b16 %v463, %v462
      %v478 = vpack.c.b16 %v465, %v464
      %v479 = vpack.c.b16 %v467, %v466
      %v480 = vpack.c.b16 %v469, %v468
      %v481 = vpack.c.b16 %v471, %v470
      %v482 = vpack.c.b16 %v473, %v472
      %v483 = vpack.c.b16 %v475, %v474
      %v508 = vunpack.c.l.b16 %v428
      %v509 = vunpack.c.l.b16 %v429
      %v510 = vunpack.c.l.b16 %v430
      %v511 = vunpack.c.l.b16 %v431
      %v512 = vunpack.c.l.b16 %v432
      %v513 = vunpack.c.l.b16 %v433
      %v514 = vunpack.c.l.b16 %v434
      %v515 = vunpack.c.l.b16 %v435
      %v516 = vunpack.c.l.b16 %v436
      %v517 = vunpack.c.l.b16 %v437
      %v518 = vunpack.c.l.b16 %v438
      %v519 = vunpack.c.l.b16 %v439
      %v520 = vunpack.c.l.b16 %v440
      %v521 = vunpack.c.l.b16 %v441
      %v522 = vunpack.c.l.b16 %v442
      %v523 = vunpack.c.l.b16 %v443
      %v524 = vpack.c.b16 %v509, %v508
      %v525 = vpack.c.b16 %v511, %v510
      %v526 = vpack.c.b16 %v513, %v512
      %v527 = vpack.c.b16 %v515, %v514
      %v528 = vpack.c.b16 %v517, %v516
      %v529 = vpack.c.b16 %v519, %v518
      %v530 = vpack.c.b16 %v521, %v520
      %v531 = vpack.c.b16 %v523, %v522
      %540 = vmatpush.bf16.msra.mxu0 %v531
      %541 = vmatpush.bf16.msra.mxu0 %v530
      %542 = vmatpush.bf16.msra.mxu0 %v529
      %543 = vmatpush.bf16.msra.mxu0 %v528
      %544 = vmatpush.bf16.msra.mxu0 %v527
      %545 = vmatpush.bf16.msra.mxu0 %v526
      %546 = vmatpush.bf16.msra.mxu0 %v525
      %547 = vmatpush.bf16.msra.mxu0 %v524
      %548 = vmatmul.bf16.gmra.mxu0 %v476
      %v549 = vpop.f32.mrf.mxu0
      %v550 = vadd.f32 0.0, %v549
      %v551 = vpop.f32.mrf.mxu0
      %v552 = vadd.f32 0.0, %v551
      %553 = vmatmul.bf16.gmra.mxu0 %v477
      %v554 = vpop.f32.mrf.mxu0
      %v555 = vadd.f32 0.0, %v554
      %v556 = vpop.f32.mrf.mxu0
      %v557 = vadd.f32 0.0, %v556
      %558 = vmatmul.bf16.gmra.mxu0 %v478
      %v559 = vpop.f32.mrf.mxu0
      %v560 = vadd.f32 0.0, %v559
      %v561 = vpop.f32.mrf.mxu0
      %v562 = vadd.f32 0.0, %v561
      %563 = vmatmul.bf16.gmra.mxu0 %v479
      %v564 = vpop.f32.mrf.mxu0
      %v565 = vadd.f32 0.0, %v564
      %v566 = vpop.f32.mrf.mxu0
      %v567 = vadd.f32 0.0, %v566
      %568 = vmatmul.bf16.gmra.mxu0 %v480
      %v569 = vpop.f32.mrf.mxu0
      %v570 = vadd.f32 0.0, %v569
      %v571 = vpop.f32.mrf.mxu0
      %v572 = vadd.f32 0.0, %v571
      %573 = vmatmul.bf16.gmra.mxu0 %v481
      %v574 = vpop.f32.mrf.mxu0
      %v575 = vadd.f32 0.0, %v574
      %v576 = vpop.f32.mrf.mxu0
      %v577 = vadd.f32 0.0, %v576
      %578 = vmatmul.bf16.gmra.mxu0 %v482
      %v579 = vpop.f32.mrf.mxu0
      %v580 = vadd.f32 0.0, %v579
      %v581 = vpop.f32.mrf.mxu0
      %v582 = vadd.f32 0.0, %v581
      %583 = vmatmul.bf16.gmra.mxu0 %v483
      %v584 = vpop.f32.mrf.mxu0
      %v585 = vadd.f32 0.0, %v584
      %v586 = vpop.f32.mrf.mxu0
      %v587 = vadd.f32 0.0, %v586
      %588 = vdwg.mxu0
      %v589 = vadd.f32 %v396, %v550
      %v590 = vadd.f32 %v397, %v552
      %v591 = vadd.f32 %v398, %v555
      %v592 = vadd.f32 %v399, %v557
      %v593 = vadd.f32 %v400, %v560
      %v594 = vadd.f32 %v401, %v562
      %v595 = vadd.f32 %v402, %v565
      %v596 = vadd.f32 %v403, %v567
      %v597 = vadd.f32 %v404, %v570
      %v598 = vadd.f32 %v405, %v572
      %v599 = vadd.f32 %v406, %v575
      %v600 = vadd.f32 %v407, %v577
      %v601 = vadd.f32 %v408, %v580
      %v602 = vadd.f32 %v409, %v582
      %v603 = vadd.f32 %v410, %v585
      %v604 = vadd.f32 %v411, %v587
      %v605 = vld [vmem:[%s5] sm:$0x1]
      %v607 = vperm.slane %v605, 0
      %v609 = vadd.f32 %v589, %v607
      %v610 = vadd.f32 %v590, %v607
      %v611 = vadd.f32 %v591, %v607
      %v612 = vadd.f32 %v592, %v607
      %v613 = vadd.f32 %v593, %v607
      %v614 = vadd.f32 %v594, %v607
      %v615 = vadd.f32 %v595, %v607
      %v616 = vadd.f32 %v596, %v607
      %v617 = vadd.f32 %v597, %v607
      %v618 = vadd.f32 %v598, %v607
      %v619 = vadd.f32 %v599, %v607
      %v620 = vadd.f32 %v600, %v607
      %v621 = vadd.f32 %v601, %v607
      %v622 = vadd.f32 %v602, %v607
      %v623 = vadd.f32 %v603, %v607
      %v624 = vadd.f32 %v604, %v607
      %v625 = vmax.f32 %v609, 0.0
      %v626 = vmax.f32 %v610, 0.0
      %v627 = vmax.f32 %v611, 0.0
      %v628 = vmax.f32 %v612, 0.0
      %v629 = vmax.f32 %v613, 0.0
      %v630 = vmax.f32 %v614, 0.0
      %v631 = vmax.f32 %v615, 0.0
      %v632 = vmax.f32 %v616, 0.0
      %v633 = vmax.f32 %v617, 0.0
      %v634 = vmax.f32 %v618, 0.0
      %v635 = vmax.f32 %v619, 0.0
      %v636 = vmax.f32 %v620, 0.0
      %v637 = vmax.f32 %v621, 0.0
      %v638 = vmax.f32 %v622, 0.0
      %v639 = vmax.f32 %v623, 0.0
      %v640 = vmax.f32 %v624, 0.0
      %v641 = vpack.c.bf16 %v625, %v625
      %v642 = vpack.c.bf16 %v626, %v626
      %v643 = vpack.c.bf16 %v627, %v627
      %v644 = vpack.c.bf16 %v628, %v628
      %v645 = vpack.c.bf16 %v629, %v629
      %v646 = vpack.c.bf16 %v630, %v630
      %v647 = vpack.c.bf16 %v631, %v631
      %v648 = vpack.c.bf16 %v632, %v632
      %v649 = vpack.c.bf16 %v633, %v633
      %v650 = vpack.c.bf16 %v634, %v634
      %v651 = vpack.c.bf16 %v635, %v635
      %v652 = vpack.c.bf16 %v636, %v636
      %v653 = vpack.c.bf16 %v637, %v637
      %v654 = vpack.c.bf16 %v638, %v638
      %v655 = vpack.c.bf16 %v639, %v639
      %v656 = vpack.c.bf16 %v640, %v640
      %657 = vst [vmem:[#allocation8] sm:$0xf] %v641
      %658 = vst [vmem:[#allocation8 + $0x4] sm:$0xf] %v642
      %659 = vst [vmem:[#allocation8 + $0x8] sm:$0xf] %v643
      %660 = vst [vmem:[#allocation8 + $0xc] sm:$0xf] %v644
      %661 = vst [vmem:[#allocation8 + $0x10] sm:$0xf] %v645
      %662 = vst [vmem:[#allocation8 + $0x14] sm:$0xf] %v646
      %663 = vst [vmem:[#allocation8 + $0x18] sm:$0xf] %v647
      %664 = vst [vmem:[#allocation8 + $0x1c] sm:$0xf] %v648
      %665 = vst [vmem:[#allocation8 + $0x20] sm:$0xf] %v649
      %666 = vst [vmem:[#allocation8 + $0x24] sm:$0xf] %v650
      %667 = vst [vmem:[#allocation8 + $0x28] sm:$0xf] %v651
      %668 = vst [vmem:[#allocation8 + $0x2c] sm:$0xf] %v652
      %669 = vst [vmem:[#allocation8 + $0x30] sm:$0xf] %v653
      %670 = vst [vmem:[#allocation8 + $0x34] sm:$0xf] %v654
      %671 = vst [vmem:[#allocation8 + $0x38] sm:$0xf] %v655
      %672 = vst [vmem:[#allocation8 + $0x3c] sm:$0xf] %v656
    $region41: #{tpu_custom_call.1} parent=1 // pred_fallthru
      _
    // Predicated region
    $region42: #{tpu_custom_call.1} parent=1 // pred_check
      _
    $region43: #{tpu_custom_call.1} parent=1 // pred_check_branch
      %674 = sbr.rel (0) target = $region45
    $region44: #{tpu_custom_call.1} parent=1 // pred_region
      %676 = vsyncadd [#allocation5], 0
      %s677 = sshll.u32 [#allocation8], 4
      %s678 = int_to_ptr.vmem [resolvable:$true] %s677
      %s679 = sshll.u32 %s6, 4
      %s680 = int_to_ptr.hbm [resolvable:$true] %s679
      %685 = dma.vmem_to_hbm [thread:$0]  %s678, 1024, %s680, [#allocation5], 64, 64, 4
    $region45: #{tpu_custom_call.1} parent=1 // pred_fallthru
      _
    // Predicated region
    $region46: #{tpu_custom_call.1} parent=1 // pred_check
      _
    $region47: #{tpu_custom_call.1} parent=1 // pred_check_branch
      %687 = sbr.rel (0) target = $region49
    $region48: #{tpu_custom_call.1} parent=1 // pred_region
      %689 = dma.done [#allocation5], 1024
    $region49: #{tpu_custom_call.1} parent=1 // pred_fallthru
      _
    %690 = vsyncpa [#allocation4], 1
    %691 = vsyncpa [#allocation7], 1
    %692 = vsyncpa [#allocation5], 1

</llo_original>
